<compile_context>
chip_gen: v6e
topology: v6e:2x2x1
jax: 0.10.0
libtpu: 0.0.40
codegen_flags: <defaults>
</compile_context>

<pallas_src>
import functools

import jax
import jax.numpy as jnp
from jax.experimental import pallas as pl
from jax.experimental.pallas import tpu as pltpu


def _hb_unfolder_kernel(lat_ref, w_ref, b_ref, out_ref, *, half: int):
    """One batch tile of the HBUnfolder forward.

    lat_ref: (TM, lat_size)    VMEM
    w_ref:   (lat_size, D)     VMEM (full weight, grid-invariant -> resident)
    b_ref:   (1, D)            VMEM
    out_ref: (TM, D)           VMEM, D = 2 * half
    """
    # MXU matmul in native dtype with f32 accumulation (no VPU upcast pass).
    proj = jnp.dot(lat_ref[...], w_ref[...],
                   preferred_element_type=jnp.float32)
    proj = proj + b_ref[...].astype(jnp.float32)

    u = proj[:, :half]
    v = proj[:, half:]
    # exp() runs on the EUP (its own VLIW slot); multiplies stay on the VPU.
    # Two static lane-slab stores implement the chunk/exp/cat fusion.
    out_ref[:, :half] = (v * jnp.exp(u)).astype(out_ref.dtype)
    out_ref[:, half:] = (v * jnp.exp(-u)).astype(out_ref.dtype)


def _round_up(x, m):
    return ((x + m - 1) // m) * m


def _min_sublane(dtype):
    # Min second-to-last tile dim: 8 (f32), 16 (bf16), 32 (int8/fp8).
    return max(8, 32 // jnp.dtype(dtype).itemsize)


def _vmem_budget_bytes():
    """Generation-aware scoped-VMEM budget (leaves headroom vs physical)."""
    try:
        phys = int(pltpu.get_tpu_info().vmem_capacity_bytes)
    except Exception:
        phys = 64 * 1024 * 1024  # conservative: v7x per-TensorCore VMEM
    return max(32 * 1024 * 1024, min(int(phys * 0.7), 100 * 1024 * 1024))


def _resident_spec(shape, single_buffer):
    """BlockSpec for a grid-invariant operand (always block (0, ..., 0)).

    Single-buffers it via pipeline_mode=pl.Buffered(1) when the installed
    Pallas supports the kwarg (grid-invariant blocks gain nothing from
    double-buffering); falls back to a plain BlockSpec otherwise.
    """
    index_map = lambda i: (0,) * len(shape)
    if single_buffer:
        try:
            return pl.BlockSpec(shape, index_map,
                                pipeline_mode=pl.Buffered(1))
        except Exception:
            pass
    return pl.BlockSpec(shape, index_map)


def hb_unfolder(lat, w_t, b, *, tm=None):
    """lat: (B, lat_size), w_t: (lat_size, out_dim), b: (out_dim,) -> (B, out_dim)."""
    B, lat_size = lat.shape
    lat_size_w, out_dim = w_t.shape
    assert lat_size == lat_size_w
    assert out_dim % 2 == 0
    half = out_dim // 2

    in_it = jnp.dtype(lat.dtype).itemsize
    w_it = jnp.dtype(w_t.dtype).itemsize
    b_it = jnp.dtype(b.dtype).itemsize
    out_it = in_it  # output dtype == input dtype
    sub = _min_sublane(lat.dtype)

    budget = _vmem_budget_bytes()

    def need_bytes(t):
        # Double-buffered lat/out tiles + single resident weight/bias copy
        # + f32 proj / exp live temporaries produced by the epilogue.
        return (2 * t * lat_size * in_it
                + 2 * t * out_dim * out_it
                + lat_size * out_dim * w_it
                + out_dim * b_it
                + 3 * t * out_dim * 4)

    if tm is None:
        # Mem-bound kernel: big batch tiles amortize the ~0.35 us/grid-step
        # overhead (measured mem-bound tiling: 256 ~ 63% of HBM roofline,
        # 512 ~ 85%, 1024 ~ 86%).  Keep >= 2 grid steps so the "parallel"
        # batch axis can be sharded across both v7x TensorCores.
        tm = min(1024, _round_up(B, sub))
        tm = min(tm, _round_up(max(1, pl.cdiv(B, 2)), sub))
        while tm > sub and need_bytes(tm) > budget:
            tm = max(sub, _round_up(tm // 2, sub))
    tm = max(sub, _round_up(tm, sub))

    # Ragged tail: Pallas masks the boundary block (reads of the pad rows are
    # garbage but row-independent; their writes are dropped), so no wrapper
    # jnp.pad / out[:B] HBM round trips are needed.
    num_tiles = pl.cdiv(B, tm)

    b2d = b.reshape(1, out_dim)

    cost = pl.CostEstimate(
        flops=2 * B * lat_size * out_dim + 3 * B * out_dim,
        transcendentals=B * out_dim,
        bytes_accessed=(B * lat_size * in_it + lat_size * out_dim * w_it
                        + out_dim * b_it + B * out_dim * out_it),
    )

    out_shape = jax.ShapeDtypeStruct((B, out_dim), lat.dtype)
    lat_spec = pl.BlockSpec((tm, lat_size), lambda i: (i, 0))
    out_spec = pl.BlockSpec((tm, out_dim), lambda i: (i, 0))
    kern = functools.partial(_hb_unfolder_kernel, half=half)
    cparams = pltpu.CompilerParams(dimension_semantics=("parallel",),
                                   vmem_limit_bytes=budget)

    last_err = None
    for single_buffer in (True, False):  # retry without Buffered(1) if rejected
        try:
            out = pl.pallas_call(
                kern,
                out_shape=out_shape,
                grid_spec=pltpu.PrefetchScalarGridSpec(
                    num_scalar_prefetch=0,
                    grid=(num_tiles,),
                    in_specs=[
                        lat_spec,                                        # lat tile
                        _resident_spec((lat_size, out_dim), single_buffer),  # weight
                        _resident_spec((1, out_dim), single_buffer),         # bias
                    ],
                    out_specs=out_spec,
                ),
                compiler_params=cparams,
                cost_estimate=cost,
            )(lat, w_t, b2d)
            return jax.block_until_ready(out)
        except Exception as e:  # fall back to plain double-buffered specs
            last_err = e
    raise last_err


if __name__ == "__main__":
    # Module hyperparameters (small demo shapes; lat_size must be even).
    LAT_SIZE = 64
    EXP_FACTOR = 8
    B = 16
    OUT_DIM = LAT_SIZE * EXP_FACTOR
    HALF = OUT_DIM // 2

    key = jax.random.PRNGKey(0)
    kx, kw, kb = jax.random.split(key, 3)

    lat = jax.random.normal(kx, (B, LAT_SIZE), dtype=jnp.float32)
    # nn.Linear(lat_size, lat_size*exp_factor): weight (OUT_DIM, LAT_SIZE),
    # bias (OUT_DIM,), uniform(-1/sqrt(lat_size), 1/sqrt(lat_size)) init.
    bound = 1.0 / (LAT_SIZE ** 0.5)
    w = jax.random.uniform(kw, (OUT_DIM, LAT_SIZE), jnp.float32, -bound, bound)
    b = jax.random.uniform(kb, (OUT_DIM,), jnp.float32, -bound, bound)

    out = hb_unfolder(lat, w.T, b)   # pre-transposed weight for kernel layout
    out = jax.block_until_ready(out)

    # Pure-JAX reference.
    proj = lat @ w.T + b
    u, v = proj[:, :HALF], proj[:, HALF:]
    ref = jnp.concatenate([v * jnp.exp(u), v * jnp.exp(-u)], axis=1)

    assert out.shape == (B, OUT_DIM)
    assert jnp.allclose(out, ref, atol=1e-4, rtol=1e-4)

    print("KERNEL_OK")
</pallas_src>

<mosaic_0001>
module attributes {stable_mosaic.version = 11 : i64} {
  func.func @_hb_unfolder_kernel(%arg0: i32, %arg1: memref<8x64xf32, #tpu.memory_space<vmem>>, %arg2: memref<64x512xf32, #tpu.memory_space<vmem>>, %arg3: memref<1x512xf32, #tpu.memory_space<vmem>>, %arg4: memref<8x512xf32, #tpu.memory_space<vmem>>) attributes {dimension_semantics = [#tpu.dimension_semantics<parallel>], iteration_bounds = array<i64: 2>, scalar_prefetch = 0 : i64, scratch_operands = 0 : i64, tpu.core_type = #tpu.core_type<tc>, window_params = [{transform_indices = @transform_0, window_bounds = array<i64: 8, 64>}, {pipeline_mode = #tpu.pipeline_mode<synchronous>, transform_indices = @transform_1, window_bounds = array<i64: 64, 512>}, {pipeline_mode = #tpu.pipeline_mode<synchronous>, transform_indices = @transform_2, window_bounds = array<i64: 1, 512>}, {transform_indices = @transform_3, window_bounds = array<i64: 8, 512>}]} {
    %c0 = arith.constant 0 : index
    %c0_0 = arith.constant 0 : index
    %0 = vector.load %arg1[%c0, %c0_0] : memref<8x64xf32, #tpu.memory_space<vmem>>, vector<8x64xf32>
    %c0_1 = arith.constant 0 : index
    %c0_2 = arith.constant 0 : index
    %1 = vector.load %arg2[%c0_1, %c0_2] : memref<64x512xf32, #tpu.memory_space<vmem>>, vector<64x512xf32>
    %cst = arith.constant dense<0.000000e+00> : vector<8x512xf32>
    %2 = tpu.matmul %0, %1, %cst {dimension_numbers = #tpu.dot_dimension_numbers<[1], [0], [0], [1], [0, 0, 1, 1], [], []>} : vector<8x64xf32>, vector<64x512xf32>, vector<8x512xf32> -> vector<8x512xf32>
    %c0_3 = arith.constant 0 : index
    %c0_4 = arith.constant 0 : index
    %3 = vector.load %arg3[%c0_3, %c0_4] : memref<1x512xf32, #tpu.memory_space<vmem>>, vector<1x512xf32>
    %4 = vector.broadcast %3 : vector<1x512xf32> to vector<8x512xf32>
    %5 = arith.addf %2, %4 : vector<8x512xf32>
    %6 = vector.extract_strided_slice %5 {offsets = [0, 0], sizes = [8, 256], strides = [1, 1]} : vector<8x512xf32> to vector<8x256xf32>
    %7 = vector.extract_strided_slice %5 {offsets = [0, 256], sizes = [8, 256], strides = [1, 1]} : vector<8x512xf32> to vector<8x256xf32>
    %8 = math.exp %6 : vector<8x256xf32>
    %9 = arith.mulf %7, %8 : vector<8x256xf32>
    %c0_5 = arith.constant 0 : index
    %c0_6 = arith.constant 0 : index
    %10 = vector.load %arg4[%c0_5, %c0_6] : memref<8x512xf32, #tpu.memory_space<vmem>>, vector<8x256xf32>
    tpu.vector_store %arg4[%c0_5, %c0_6], %9 {strides = array<i32>} : memref<8x512xf32, #tpu.memory_space<vmem>>, vector<8x256xf32>,
    %cst_7 = arith.constant 0.000000e+00 : f32
    %11 = vector.broadcast %cst_7 : f32 to vector<8x256xf32>
    %12 = arith.subf %11, %6 : vector<8x256xf32>
    %13 = math.exp %12 : vector<8x256xf32>
    %14 = arith.mulf %7, %13 : vector<8x256xf32>
    %c0_8 = arith.constant 0 : index
    %c256 = arith.constant 256 : index
    %15 = vector.load %arg4[%c0_8, %c256] : memref<8x512xf32, #tpu.memory_space<vmem>>, vector<8x256xf32>
    tpu.vector_store %arg4[%c0_8, %c256], %14 {strides = array<i32>} : memref<8x512xf32, #tpu.memory_space<vmem>>, vector<8x256xf32>,
    return
  }
  func.func @transform_0(%arg0: i32) -> (i32, i32) {
    %c0_i32 = arith.constant 0 : i32
    %c0_i32_0 = arith.constant 0 : i32
    return %arg0, %c0_i32 : i32, i32
  }
  func.func @transform_1(%arg0: i32) -> (i32, i32) {
    %c0_i32 = arith.constant 0 : i32
    %c0_i32_0 = arith.constant 0 : i32
    %c0_i32_1 = arith.constant 0 : i32
    return %c0_i32, %c0_i32_0 : i32, i32
  }
  func.func @transform_2(%arg0: i32) -> (i32, i32) {
    %c0_i32 = arith.constant 0 : i32
    %c0_i32_0 = arith.constant 0 : i32
    %c0_i32_1 = arith.constant 0 : i32
    return %c0_i32, %c0_i32_0 : i32, i32
  }
  func.func @transform_3(%arg0: i32) -> (i32, i32) {
    %c0_i32 = arith.constant 0 : i32
    %c0_i32_0 = arith.constant 0 : i32
    return %arg0, %c0_i32 : i32, i32
  }
}

module attributes {stable_mosaic.version = 11 : i64} {
  func.func @_hb_unfolder_kernel(%arg0: i32, %arg1: memref<8x64xf32, #tpu.memory_space<vmem>>, %arg2: memref<64x512xf32, #tpu.memory_space<vmem>>, %arg3: memref<1x512xf32, #tpu.memory_space<vmem>>, %arg4: memref<8x512xf32, #tpu.memory_space<vmem>>) attributes {dimension_semantics = [#tpu.dimension_semantics<parallel>], iteration_bounds = array<i64: 2>, scalar_prefetch = 0 : i64, scratch_operands = 0 : i64, tpu.core_type = #tpu.core_type<tc>, window_params = [{transform_indices = @transform_0, window_bounds = array<i64: 8, 64>}, {pipeline_mode = #tpu.pipeline_mode<synchronous>, transform_indices = @transform_1, window_bounds = array<i64: 64, 512>}, {pipeline_mode = #tpu.pipeline_mode<synchronous>, transform_indices = @transform_2, window_bounds = array<i64: 1, 512>}, {transform_indices = @transform_3, window_bounds = array<i64: 8, 512>}]} {
    %c0 = arith.constant 0 : index
    %c0_0 = arith.constant 0 : index
    %0 = vector.load %arg1[%c0, %c0_0] : memref<8x64xf32, #tpu.memory_space<vmem>>, vector<8x64xf32>
    %c0_1 = arith.constant 0 : index
    %c0_2 = arith.constant 0 : index
    %1 = vector.load %arg2[%c0_1, %c0_2] : memref<64x512xf32, #tpu.memory_space<vmem>>, vector<64x512xf32>
    %cst = arith.constant dense<0.000000e+00> : vector<8x512xf32>
    %2 = tpu.matmul %0, %1, %cst {dimension_numbers = #tpu.dot_dimension_numbers<[1], [0], [0], [1], [0, 0, 1, 1], [], []>} : vector<8x64xf32>, vector<64x512xf32>, vector<8x512xf32> -> vector<8x512xf32>
    %c0_3 = arith.constant 0 : index
    %c0_4 = arith.constant 0 : index
    %3 = vector.load %arg3[%c0_3, %c0_4] : memref<1x512xf32, #tpu.memory_space<vmem>>, vector<1x512xf32>
    %4 = vector.broadcast %3 : vector<1x512xf32> to vector<8x512xf32>
    %5 = arith.addf %2, %4 : vector<8x512xf32>
    %6 = vector.extract_strided_slice %5 {offsets = [0, 0], sizes = [8, 256], strides = [1, 1]} : vector<8x512xf32> to vector<8x256xf32>
    %7 = vector.extract_strided_slice %5 {offsets = [0, 256], sizes = [8, 256], strides = [1, 1]} : vector<8x512xf32> to vector<8x256xf32>
    %8 = math.exp %6 : vector<8x256xf32>
    %9 = arith.mulf %7, %8 : vector<8x256xf32>
    %c0_5 = arith.constant 0 : index
    %c0_6 = arith.constant 0 : index
    %10 = vector.load %arg4[%c0_5, %c0_6] : memref<8x512xf32, #tpu.memory_space<vmem>>, vector<8x256xf32>
    tpu.vector_store %arg4[%c0_5, %c0_6], %9 {strides = array<i32>} : memref<8x512xf32, #tpu.memory_space<vmem>>, vector<8x256xf32>,
    %cst_7 = arith.constant 0.000000e+00 : f32
    %11 = vector.broadcast %cst_7 : f32 to vector<8x256xf32>
    %12 = arith.subf %11, %6 : vector<8x256xf32>
    %13 = math.exp %12 : vector<8x256xf32>
    %14 = arith.mulf %7, %13 : vector<8x256xf32>
    %c0_8 = arith.constant 0 : index
    %c256 = arith.constant 256 : index
    %15 = vector.load %arg4[%c0_8, %c256] : memref<8x512xf32, #tpu.memory_space<vmem>>, vector<8x256xf32>
    tpu.vector_store %arg4[%c0_8, %c256], %14 {strides = array<i32>} : memref<8x512xf32, #tpu.memory_space<vmem>>, vector<8x256xf32>,
    return
  }
  func.func @transform_0(%arg0: i32) -> (i32, i32) {
    %c0_i32 = arith.constant 0 : i32
    %c0_i32_0 = arith.constant 0 : i32
    return %arg0, %c0_i32 : i32, i32
  }
  func.func @transform_1(%arg0: i32) -> (i32, i32) {
    %c0_i32 = arith.constant 0 : i32
    %c0_i32_0 = arith.constant 0 : i32
    %c0_i32_1 = arith.constant 0 : i32
    return %c0_i32, %c0_i32_0 : i32, i32
  }
  func.func @transform_2(%arg0: i32) -> (i32, i32) {
    %c0_i32 = arith.constant 0 : i32
    %c0_i32_0 = arith.constant 0 : i32
    %c0_i32_1 = arith.constant 0 : i32
    return %c0_i32, %c0_i32_0 : i32, i32
  }
  func.func @transform_3(%arg0: i32) -> (i32, i32) {
    %c0_i32 = arith.constant 0 : i32
    %c0_i32_0 = arith.constant 0 : i32
    return %arg0, %c0_i32 : i32, i32
  }
}

</mosaic_0001>

<llo_original>
// kernel: tpu_custom_call.1
$region0: #{tpu_custom_call.1}
  #allocation0 [shape = 'u32[]', space=smem, size = 0x4, offset = 0x4, fixed_abs, tag = 'smem constant byte address 0x4 - core index']
  #allocation1 [shape = 'u32[144,128]{1,0:T(1,128)}', space=vmem, size = 0x12000, scoped, tag = 'internal scratch']
  %s0 = inlined_call_operand.hbm [shape: f32[16,64], index: 0, kind: input, shape index: {}]
  %s1 = inlined_call_operand.hbm [shape: f32[64,512], index: 1, kind: input, shape index: {}]
  %s2 = inlined_call_operand.hbm [shape: f32[1,512], index: 2, kind: input, shape index: {}]
  %s3 = inlined_call_operand.hbm [shape: f32[16,512], index: 3, kind: output, shape index: {}]
  %s4 = sld [smem:[#allocation0]]
  $region57: #{tpu_custom_call.1} parent=0
    _
  %s6 = ssub.s32 1, %s4
  %s7 = scalar_select 0, %s6, %s4
  $region1: #{tpu_custom_call.1} parent=0
    #allocation2 [shape = 'u8[8192]{0}', space=vmem, size = 0x2000, scoped, tag = 'input window, operand 0']
    #allocation3 [shape = 's32[2]{0}', space=sflag, size = 0x8, scoped, tag = 'scoped memory for tpu_custom_call.1']
    #allocation4 [shape = 's32[2]{0}', space=sflag, size = 0x8, scoped, tag = 'scoped memory for tpu_custom_call.1']
    #allocation5 [shape = 'u8[131072]{0}', space=vmem, size = 0x20000, scoped, tag = 'input window, operand 1, single buffered']
    #allocation6 [shape = 's32[1]{0}', space=sflag, size = 0x4, scoped, tag = 'scoped memory for tpu_custom_call.1']
    #allocation7 [shape = 'u8[2048]{0}', space=vmem, size = 0x800, scoped, tag = 'input window, operand 2, single buffered']
    #allocation8 [shape = 'u8[32768]{0}', space=vmem, size = 0x8000, scoped, tag = 'output window, operand 0']
    %8 = vsyncpa [#allocation3], 0
    %s9 = scalar_lea.sflag [#allocation3], 1
    %10 = vsyncpa %s9, 0
    %11 = vsyncpa [#allocation6], 0
    %12 = vsyncpa [#allocation4], 0
    %s13 = scalar_lea.sflag [#allocation4], 1
    %14 = vsyncpa %s13, 0
    loop: start=0, step=1, limit=4
    $region2: #{tpu_custom_call.1} parent=1 // loop_pre_header
      _
    $region3: #{tpu_custom_call.1} parent=1 // loop_header
      %s16 = sphi 0, %s20
      %p17 = scmp.ge.s32.totalorder %s16, 4
      %s26 = sphi 0, %s28
      %s29 = sphi 0, %s26
      %s30 = sphi 0, %s29
      %s46 = sphi 0, %s30
      %s50 = sphi 0, %s50
      %s52 = sphi 0, %s50
      %s53 = sphi 0, %s52
      %s67 = sphi 0, %s53
      %s71 = sphi 0, %s71
      %s73 = sphi 0, %s71
      %s74 = sphi 0, %s73
      %s88 = sphi 0, %s74
      %s94 = sphi 0, %s96
      %s97 = sphi 0, %s94
      %s98 = sphi 0, %s97
      %s114 = sphi 0, %s98
    $region4: #{tpu_custom_call.1} parent=1 // loop_header_branch
      %19 = sbr.rel (%p17) target = $region8
    $region5: #{tpu_custom_call.1} parent=1 // loop_body
      %s21 = ssub.s32 %s16, 1
      %s22 = ssub.s32 %s16, 2
      %s23 = sadd.s32 %s16, 1
      %s24 = ssub.s32 %s16, %s23
      %p25 = scmp.eq.s32.totalorder %s24, 0
      %s27 = sadd.s32 %s26, 1
      %s28 = scalar_select %p25, %s26, %s27
      %p31 = pneg %p25
      %p32 = scmp.eq.s32.totalorder %s16, 1
      %p33 = por %p31, %p32
      %p34 = scmp.ne.s32.totalorder %s26, %s29
      %p35 = scmp.eq.s32.totalorder %s16, 0
      %p36 = por %p34, %p35
      %p37 = scmp.ne.s32.totalorder %s26, %s29
      %p38 = scmp.eq.s32.totalorder %s21, 1
      %p39 = por %p37, %p38
      %p40 = scmp.ne.s32.totalorder %s29, %s30
      %p41 = scmp.eq.s32.totalorder %s21, 0
      %p42 = por %p40, %p41
      %p43 = scmp.ne.s32.totalorder %s29, %s30
      %p44 = scmp.eq.s32.totalorder %s22, 1
      %p45 = por %p43, %p44
      %p47 = scmp.ne.s32.totalorder %s30, %s46
      %p48 = scmp.eq.s32.totalorder %s22, 0
      %p49 = por %p47, %p48
      %s51 = sadd.s32 %s50, 1
      %p54 = scmp.eq.s32.totalorder %s16, 1
      %p55 = scmp.ne.s32.totalorder %s50, %s52
      %p56 = scmp.eq.s32.totalorder %s16, 0
      %p57 = por %p55, %p56
      %p58 = scmp.ne.s32.totalorder %s50, %s52
      %p59 = scmp.eq.s32.totalorder %s21, 1
      %p60 = por %p58, %p59
      %p61 = scmp.ne.s32.totalorder %s52, %s53
      %p62 = scmp.eq.s32.totalorder %s21, 0
      %p63 = por %p61, %p62
      %p64 = scmp.ne.s32.totalorder %s52, %s53
      %p65 = scmp.eq.s32.totalorder %s22, 1
      %p66 = por %p64, %p65
      %p68 = scmp.ne.s32.totalorder %s53, %s67
      %p69 = scmp.eq.s32.totalorder %s22, 0
      %p70 = por %p68, %p69
      %s72 = sadd.s32 %s71, 1
      %p75 = scmp.eq.s32.totalorder %s16, 1
      %p76 = scmp.ne.s32.totalorder %s71, %s73
      %p77 = scmp.eq.s32.totalorder %s16, 0
      %p78 = por %p76, %p77
      %p79 = scmp.ne.s32.totalorder %s71, %s73
      %p80 = scmp.eq.s32.totalorder %s21, 1
      %p81 = por %p79, %p80
      %p82 = scmp.ne.s32.totalorder %s73, %s74
      %p83 = scmp.eq.s32.totalorder %s21, 0
      %p84 = por %p82, %p83
      %p85 = scmp.ne.s32.totalorder %s73, %s74
      %p86 = scmp.eq.s32.totalorder %s22, 1
      %p87 = por %p85, %p86
      %p89 = scmp.ne.s32.totalorder %s74, %s88
      %p90 = scmp.eq.s32.totalorder %s22, 0
      %p91 = por %p89, %p90
      %s92 = ssub.s32 %s16, %s23
      %p93 = scmp.eq.s32.totalorder %s92, 0
      %s95 = sadd.s32 %s94, 1
      %s96 = scalar_select %p93, %s94, %s95
      %p99 = pneg %p93
      %p100 = scmp.eq.s32.totalorder %s16, 1
      %p101 = por %p99, %p100
      %p102 = scmp.ne.s32.totalorder %s94, %s97
      %p103 = scmp.eq.s32.totalorder %s16, 0
      %p104 = por %p102, %p103
      %p105 = scmp.ne.s32.totalorder %s94, %s97
      %p106 = scmp.eq.s32.totalorder %s21, 1
      %p107 = por %p105, %p106
      %p108 = scmp.ne.s32.totalorder %s97, %s98
      %p109 = scmp.eq.s32.totalorder %s21, 0
      %p110 = por %p108, %p109
      %p111 = scmp.ne.s32.totalorder %s97, %s98
      %p112 = scmp.eq.s32.totalorder %s22, 1
      %p113 = por %p111, %p112
      %p115 = scmp.ne.s32.totalorder %s98, %s114
      %p116 = scmp.eq.s32.totalorder %s22, 0
      %p117 = por %p115, %p116
      %p118 = scmp.le.s32.totalorder 1, %s16
      %p119 = scmp.lt.s32.totalorder %s16, 3
      %p120 = pnand %p118, %p119
      %p121 = pneg %p120
      // Predicated region
      $region9: #{tpu_custom_call.1} parent=5 // pred_check
        _
      $region10: #{tpu_custom_call.1} parent=5 // pred_check_branch
        %123 = sbr.rel (%p120) target = $region12
      $region11: #{tpu_custom_call.1} parent=5 // pred_region
        %s124 = ssub.s32 %s16, 1
        // Predicated region
        $region13: #{tpu_custom_call.1} parent=11 // pred_check
          %p125 = pneg %p63
        $region14: #{tpu_custom_call.1} parent=11 // pred_check_branch
          %127 = sbr.rel (%p125) target = $region16
        $region15: #{tpu_custom_call.1} parent=11 // pred_region
          %s129 = ssub.s32 4096, 4096
          %130 = vsyncadd [#allocation6], %s129
          %s131 = sshll.u32 [#allocation5], 4
          %s132 = int_to_ptr.vmem [resolvable:$true] %s131
          %137 = dma.hbm_to_vmem [thread:$0]  %s1, 4096, %s132, [#allocation6], 512, 512, 32
        $region16: #{tpu_custom_call.1} parent=11 // pred_fallthru
          _
        // Predicated region
        $region17: #{tpu_custom_call.1} parent=11 // pred_check
          %p138 = pneg %p84
        $region18: #{tpu_custom_call.1} parent=11 // pred_check_branch
          %140 = sbr.rel (%p138) target = $region20
        $region19: #{tpu_custom_call.1} parent=11 // pred_region
          %s142 = ssub.s32 64, 64
          %143 = vsyncadd [#allocation6], %s142
          %s145 = sshll.u32 [#allocation7], 4
          %s146 = int_to_ptr.vmem [resolvable:$true] %s145
          %148 = dma.hbm_to_vmem [thread:$0]  %s2, 64, %s146, [#allocation6]
        $region20: #{tpu_custom_call.1} parent=11 // pred_fallthru
          _
      $region12: #{tpu_custom_call.1} parent=5 // pred_fallthru
        _
      %p149 = scmp.lt.s32.totalorder %s16, 2
      // Predicated region
      $region21: #{tpu_custom_call.1} parent=5 // pred_check
        %p150 = pneg %p149
      $region22: #{tpu_custom_call.1} parent=5 // pred_check_branch
        %152 = sbr.rel (%p150) target = $region24
      $region23: #{tpu_custom_call.1} parent=5 // pred_region
        // Predicated region
        $region25: #{tpu_custom_call.1} parent=23 // pred_check
          %p153 = pneg %p36
        $region26: #{tpu_custom_call.1} parent=23 // pred_check_branch
          %155 = sbr.rel (%p153) target = $region28
        $region27: #{tpu_custom_call.1} parent=23 // pred_region
          %s156 = sand.u32 %s26, 1
          %s157 = scalar_lea.sflag [#allocation3], %s156
          %s158 = sand.u32 %s26, 1
          %s159 = smul.addr %s158, 8
          %s160 = scalar_lea.vmem [#allocation2], %s159
          %s162 = ssub.s32 128, 128
          %163 = vsyncadd %s157, %s162
          %s164 = smul.addr %s16, 128
          %s165 = scalar_lea.hbm %s0, %s164
          %s167 = sshll.u32 %s160, 4
          %s168 = int_to_ptr.vmem [resolvable:$true] %s167
          %170 = dma.hbm_to_vmem [thread:$0]  %s165, 128, %s168, %s157
        $region28: #{tpu_custom_call.1} parent=23 // pred_fallthru
          _
      $region24: #{tpu_custom_call.1} parent=5 // pred_fallthru
        _
      %p171 = scmp.le.s32.totalorder 1, %s16
      %p172 = scmp.lt.s32.totalorder %s16, 3
      %p173 = pnand %p171, %p172
      %p174 = pneg %p173
      // Predicated region
      $region29: #{tpu_custom_call.1} parent=5 // pred_check
        _
      $region30: #{tpu_custom_call.1} parent=5 // pred_check_branch
        %176 = sbr.rel (%p173) target = $region32
      $region31: #{tpu_custom_call.1} parent=5 // pred_region
        %s177 = ssub.s32 %s16, 1
        %s178 = sand.u32 %s29, 1
        %s179 = scalar_lea.sflag [#allocation3], %s178
        %s180 = sand.u32 %s29, 1
        %s181 = smul.addr %s180, 8
        %s182 = scalar_lea.vmem [#allocation2], %s181
        // Predicated region
        $region33: #{tpu_custom_call.1} parent=31 // pred_check
          %p183 = pneg %p42
        $region34: #{tpu_custom_call.1} parent=31 // pred_check_branch
          %185 = sbr.rel (%p183) target = $region36
        $region35: #{tpu_custom_call.1} parent=31 // pred_region
          %186 = dma.done %s179, 128
        $region36: #{tpu_custom_call.1} parent=31 // pred_fallthru
          _
        // Predicated region
        $region37: #{tpu_custom_call.1} parent=31 // pred_check
          %p187 = pneg %p63
        $region38: #{tpu_custom_call.1} parent=31 // pred_check_branch
          %189 = sbr.rel (%p187) target = $region40
        $region39: #{tpu_custom_call.1} parent=31 // pred_region
          %190 = dma.done [#allocation6], 4096
        $region40: #{tpu_custom_call.1} parent=31 // pred_fallthru
          _
        // Predicated region
        $region41: #{tpu_custom_call.1} parent=31 // pred_check
          %p191 = pneg %p84
        $region42: #{tpu_custom_call.1} parent=31 // pred_check_branch
          %193 = sbr.rel (%p191) target = $region44
        $region43: #{tpu_custom_call.1} parent=31 // pred_region
          %194 = dma.done [#allocation6], 64
        $region44: #{tpu_custom_call.1} parent=31 // pred_fallthru
          _
        %s195 = sand.u32 %s29, 1
        %s196 = scalar_lea.sflag [#allocation3], %s195
        %s197 = sand.u32 %s29, 1
        %s198 = smul.addr %s197, 8
        %s199 = scalar_lea.vmem [#allocation2], %s198
        %p200 = pneg %p42
        %p201 = pneg %p39
        %p202 = pneg %p63
        %p203 = pneg %p60
        %p204 = pneg %p84
        %p205 = pneg %p81
        %p206 = pneg %p110
        %p207 = pneg %p107
        %s208 = sand.u32 %s97, 1
        %s209 = scalar_lea.sflag [#allocation4], %s208
        %s210 = sand.u32 %s97, 1
        %s211 = smul.addr %s210, 32
        %s212 = scalar_lea.vmem [#allocation8], %s211
        %v213 = vld [vmem:[%s182] sm:$0xff]
        %v214 = vld [vmem:[#allocation5] sm:$0xff]
        %v215 = vld [vmem:[#allocation5 + $0x8] sm:$0xff]
        %v216 = vld [vmem:[#allocation5 + $0x10] sm:$0xff]
        %v217 = vld [vmem:[#allocation5 + $0x18] sm:$0xff]
        %v218 = vld [vmem:[#allocation5 + $0x20] sm:$0xff]
        %v219 = vld [vmem:[#allocation5 + $0x28] sm:$0xff]
        %v220 = vld [vmem:[#allocation5 + $0x30] sm:$0xff]
        %v221 = vld [vmem:[#allocation5 + $0x38] sm:$0xff]
        %v222 = vld [vmem:[#allocation5 + $0x40] sm:$0xff]
        %v223 = vld [vmem:[#allocation5 + $0x48] sm:$0xff]
        %v224 = vld [vmem:[#allocation5 + $0x50] sm:$0xff]
        %v225 = vld [vmem:[#allocation5 + $0x58] sm:$0xff]
        %v226 = vld [vmem:[#allocation5 + $0x60] sm:$0xff]
        %v227 = vld [vmem:[#allocation5 + $0x68] sm:$0xff]
        %v228 = vld [vmem:[#allocation5 + $0x70] sm:$0xff]
        %v229 = vld [vmem:[#allocation5 + $0x78] sm:$0xff]
        %v230 = vld [vmem:[#allocation5 + $0x80] sm:$0xff]
        %v231 = vld [vmem:[#allocation5 + $0x88] sm:$0xff]
        %v232 = vld [vmem:[#allocation5 + $0x90] sm:$0xff]
        %v233 = vld [vmem:[#allocation5 + $0x98] sm:$0xff]
        %v234 = vld [vmem:[#allocation5 + $0xa0] sm:$0xff]
        %v235 = vld [vmem:[#allocation5 + $0xa8] sm:$0xff]
        %v236 = vld [vmem:[#allocation5 + $0xb0] sm:$0xff]
        %v237 = vld [vmem:[#allocation5 + $0xb8] sm:$0xff]
        %v238 = vld [vmem:[#allocation5 + $0xc0] sm:$0xff]
        %v239 = vld [vmem:[#allocation5 + $0xc8] sm:$0xff]
        %v240 = vld [vmem:[#allocation5 + $0xd0] sm:$0xff]
        %v241 = vld [vmem:[#allocation5 + $0xd8] sm:$0xff]
        %v242 = vld [vmem:[#allocation5 + $0xe0] sm:$0xff]
        %v243 = vld [vmem:[#allocation5 + $0xe8] sm:$0xff]
        %v244 = vld [vmem:[#allocation5 + $0xf0] sm:$0xff]
        %v245 = vld [vmem:[#allocation5 + $0xf8] sm:$0xff]
        %v246 = vld [vmem:[#allocation7] sm:$0xf]
        %v248 = vlaneseq
        %v249 = vshrl.u32 %v248, 7
        %v250 = vsub.s32 0, %v249
        %v251 = vrot.slane %v246, %v250
        %v252 = vlaneseq
        %v253 = vshrl.u32 %v252, 7
        %v254 = vsub.s32 1, %v253
        %v255 = vrot.slane %v246, %v254
        %v256 = vlaneseq
        %v257 = vshrl.u32 %v256, 7
        %v258 = vsub.s32 2, %v257
        %v259 = vrot.slane %v246, %v258
        %v260 = vlaneseq
        %v261 = vshrl.u32 %v260, 7
        %v262 = vsub.s32 3, %v261
        %v263 = vrot.slane %v246, %v262
        %vm268 = vcmask 523264
        %v270 = vsel %vm268, %v213, 0
        %272 = vmatprep.subr.mxu0 0.0
        %273 = vmatpush1.msra.mxu0 0.0
        %274 = vmatprep.subr.mxu0 0.0
        %275 = vmatpush1.msra.mxu0 0.0
        %276 = vmatprep.subr.mxu0 0.0
        %277 = vmatpush1.msra.mxu0 0.0
        %278 = vmatprep.subr.mxu0 0.0
        %279 = vmatpush1.msra.mxu0 0.0
        %280 = vmatprep.subr.mxu0 0.0
        %281 = vmatpush1.msra.mxu0 0.0
        %282 = vmatprep.subr.mxu0 0.0
        %283 = vmatpush1.msra.mxu0 0.0
        %284 = vmatprep.subr.mxu0 0.0
        %285 = vmatpush1.msra.mxu0 0.0
        %286 = vmatprep.subr.mxu0 0.0
        %287 = vmatpush1.msra.mxu0 0.0
        %288 = vmatprep.subr.mxu0 %v243
        %289 = vmatpush1.msra.mxu0 %v242
        %290 = vmatprep.subr.mxu0 %v239
        %291 = vmatpush1.msra.mxu0 %v238
        %292 = vmatprep.subr.mxu0 %v235
        %293 = vmatpush1.msra.mxu0 %v234
        %294 = vmatprep.subr.mxu0 %v231
        %295 = vmatpush1.msra.mxu0 %v230
        %296 = vmatprep.subr.mxu0 %v227
        %297 = vmatpush1.msra.mxu0 %v226
        %298 = vmatprep.subr.mxu0 %v223
        %299 = vmatpush1.msra.mxu0 %v222
        %300 = vmatprep.subr.mxu0 %v219
        %301 = vmatpush1.msra.mxu0 %v218
        %302 = vmatprep.subr.mxu0 %v215
        %303 = vmatpush1.msra.mxu0 %v214
        %304 = vmatprep.subr.mxu0 0.0
        %305 = vmatpush2.msra.mxu0 0.0
        %306 = vmatprep.subr.mxu0 0.0
        %307 = vmatpush2.msra.mxu0 0.0
        %308 = vmatprep.subr.mxu0 0.0
        %309 = vmatpush2.msra.mxu0 0.0
        %310 = vmatprep.subr.mxu0 0.0
        %311 = vmatpush2.msra.mxu0 0.0
        %312 = vmatprep.subr.mxu0 0.0
        %313 = vmatpush2.msra.mxu0 0.0
        %314 = vmatprep.subr.mxu0 0.0
        %315 = vmatpush2.msra.mxu0 0.0
        %316 = vmatprep.subr.mxu0 0.0
        %317 = vmatpush2.msra.mxu0 0.0
        %318 = vmatprep.subr.mxu0 0.0
        %319 = vmatpush2.msra.mxu0 0.0
        %320 = vmatprep.subr.mxu0 0.0
        %321 = vmatpush2.msra.mxu0 0.0
        %322 = vmatprep.subr.mxu0 0.0
        %323 = vmatpush2.msra.mxu0 0.0
        %324 = vmatprep.subr.mxu0 0.0
        %325 = vmatpush2.msra.mxu0 0.0
        %326 = vmatprep.subr.mxu0 0.0
        %327 = vmatpush2.msra.mxu0 0.0
        %328 = vmatprep.subr.mxu0 0.0
        %329 = vmatpush2.msra.mxu0 0.0
        %330 = vmatprep.subr.mxu0 0.0
        %331 = vmatpush2.msra.mxu0 0.0
        %332 = vmatprep.subr.mxu0 0.0
        %333 = vmatpush2.msra.mxu0 0.0
        %334 = vmatprep.subr.mxu0 0.0
        %335 = vmatpush2.msra.mxu0 0.0
        %336 = vmatprep.mubr.f32.mxu0 0.0
        %337 = vmatmul.mubr.f32.gmra.mxu0 %v270
        %v338 = vpop.f32.mrf.mxu0
        %v339 = vadd.f32 %v251, %v338
        %v340 = vpop.f32.mrf.mxu0
        %v341 = vadd.f32 %v255, %v340
        %342 = vdwg.mxu0
        %343 = vmatprep.subr.mxu0 0.0
        %344 = vmatpush1.msra.mxu0 0.0
        %345 = vmatprep.subr.mxu0 0.0
        %346 = vmatpush1.msra.mxu0 0.0
        %347 = vmatprep.subr.mxu0 0.0
        %348 = vmatpush1.msra.mxu0 0.0
        %349 = vmatprep.subr.mxu0 0.0
        %350 = vmatpush1.msra.mxu0 0.0
        %351 = vmatprep.subr.mxu0 0.0
        %352 = vmatpush1.msra.mxu0 0.0
        %353 = vmatprep.subr.mxu0 0.0
        %354 = vmatpush1.msra.mxu0 0.0
        %355 = vmatprep.subr.mxu0 0.0
        %356 = vmatpush1.msra.mxu0 0.0
        %357 = vmatprep.subr.mxu0 0.0
        %358 = vmatpush1.msra.mxu0 0.0
        %359 = vmatprep.subr.mxu0 %v245
        %360 = vmatpush1.msra.mxu0 %v244
        %361 = vmatprep.subr.mxu0 %v241
        %362 = vmatpush1.msra.mxu0 %v240
        %363 = vmatprep.subr.mxu0 %v237
        %364 = vmatpush1.msra.mxu0 %v236
        %365 = vmatprep.subr.mxu0 %v233
        %366 = vmatpush1.msra.mxu0 %v232
        %367 = vmatprep.subr.mxu0 %v229
        %368 = vmatpush1.msra.mxu0 %v228
        %369 = vmatprep.subr.mxu0 %v225
        %370 = vmatpush1.msra.mxu0 %v224
        %371 = vmatprep.subr.mxu0 %v221
        %372 = vmatpush1.msra.mxu0 %v220
        %373 = vmatprep.subr.mxu0 %v217
        %374 = vmatpush1.msra.mxu0 %v216
        %375 = vmatprep.subr.mxu0 0.0
        %376 = vmatpush2.msra.mxu0 0.0
        %377 = vmatprep.subr.mxu0 0.0
        %378 = vmatpush2.msra.mxu0 0.0
        %379 = vmatprep.subr.mxu0 0.0
        %380 = vmatpush2.msra.mxu0 0.0
        %381 = vmatprep.subr.mxu0 0.0
        %382 = vmatpush2.msra.mxu0 0.0
        %383 = vmatprep.subr.mxu0 0.0
        %384 = vmatpush2.msra.mxu0 0.0
        %385 = vmatprep.subr.mxu0 0.0
        %386 = vmatpush2.msra.mxu0 0.0
        %387 = vmatprep.subr.mxu0 0.0
        %388 = vmatpush2.msra.mxu0 0.0
        %389 = vmatprep.subr.mxu0 0.0
        %390 = vmatpush2.msra.mxu0 0.0
        %391 = vmatprep.subr.mxu0 0.0
        %392 = vmatpush2.msra.mxu0 0.0
        %393 = vmatprep.subr.mxu0 0.0
        %394 = vmatpush2.msra.mxu0 0.0
        %395 = vmatprep.subr.mxu0 0.0
        %396 = vmatpush2.msra.mxu0 0.0
        %397 = vmatprep.subr.mxu0 0.0
        %398 = vmatpush2.msra.mxu0 0.0
        %399 = vmatprep.subr.mxu0 0.0
        %400 = vmatpush2.msra.mxu0 0.0
        %401 = vmatprep.subr.mxu0 0.0
        %402 = vmatpush2.msra.mxu0 0.0
        %403 = vmatprep.subr.mxu0 0.0
        %404 = vmatpush2.msra.mxu0 0.0
        %405 = vmatprep.subr.mxu0 0.0
        %406 = vmatpush2.msra.mxu0 0.0
        %407 = vmatprep.mubr.f32.mxu0 0.0
        %408 = vmatmul.mubr.f32.gmra.mxu0 %v270
        %v409 = vpop.f32.mrf.mxu0
        %v410 = vadd.f32 %v259, %v409
        %v411 = vpop.f32.mrf.mxu0
        %v412 = vadd.f32 %v263, %v411
        %413 = vdwg.mxu0
        %v414 = vmul.f32 %v339, 1.442695
        %v415 = vpow.pop %v414
        %v416 = vmul.f32 %v341, 1.442695
        %v417 = vpow.pop %v416
        %v418 = vmul.f32 %v410, %v415
        %v419 = vmul.f32 %v412, %v417
        %420 = vst [vmem:[%s212] sm:$0xff] %v418
        %421 = vst [vmem:[%s212 + $0x8] sm:$0xff] %v419
        %v422 = vsub.f32 0.0, %v339
        %v423 = vsub.f32 0.0, %v341
        %v424 = vmul.f32 %v422, 1.442695
        %v425 = vpow.pop %v424
        %v426 = vmul.f32 %v423, 1.442695
        %v427 = vpow.pop %v426
        %v428 = vmul.f32 %v410, %v425
        %v429 = vmul.f32 %v412, %v427
        %430 = vst [vmem:[%s212 + $0x10] sm:$0xff] %v428
        %431 = vst [vmem:[%s212 + $0x18] sm:$0xff] %v429
        %s432 = sand.u32 %s97, 1
        %s433 = scalar_lea.sflag [#allocation4], %s432
        %s434 = sand.u32 %s97, 1
        %s435 = smul.addr %s434, 32
        %s436 = scalar_lea.vmem [#allocation8], %s435
        // Predicated region
        $region45: #{tpu_custom_call.1} parent=31 // pred_check
          %p437 = pneg %p107
        $region46: #{tpu_custom_call.1} parent=31 // pred_check_branch
          %439 = sbr.rel (%p437) target = $region48
        $region47: #{tpu_custom_call.1} parent=31 // pred_region
          %s441 = ssub.s32 512, 512
          %442 = vsyncadd %s433, %s441
          %s443 = smul.addr %s21, 4
          %s444 = smul.addr %s443, 128
          %s445 = scalar_lea.hbm %s3, %s444
          %s447 = sshll.u32 %s436, 4
          %s448 = int_to_ptr.vmem [resolvable:$true] %s447
          %450 = dma.vmem_to_hbm [thread:$0]  %s448, 512, %s445, %s433
        $region48: #{tpu_custom_call.1} parent=31 // pred_fallthru
          _
      $region32: #{tpu_custom_call.1} parent=5 // pred_fallthru
        _
      %p451 = scmp.le.s32.totalorder 2, %s16
      // Predicated region
      $region49: #{tpu_custom_call.1} parent=5 // pred_check
        %p452 = pneg %p451
      $region50: #{tpu_custom_call.1} parent=5 // pred_check_branch
        %454 = sbr.rel (%p452) target = $region52
      $region51: #{tpu_custom_call.1} parent=5 // pred_region
        %s455 = ssub.s32 %s16, 2
        // Predicated region
        $region53: #{tpu_custom_call.1} parent=51 // pred_check
          %p456 = pneg %p113
        $region54: #{tpu_custom_call.1} parent=51 // pred_check_branch
          %458 = sbr.rel (%p456) target = $region56
        $region55: #{tpu_custom_call.1} parent=51 // pred_region
          %s459 = sand.u32 %s98, 1
          %s460 = scalar_lea.sflag [#allocation4], %s459
          %s461 = sand.u32 %s98, 1
          %s462 = smul.addr %s461, 32
          %s463 = scalar_lea.vmem [#allocation8], %s462
          %464 = dma.done %s460, 512
        $region56: #{tpu_custom_call.1} parent=51 // pred_fallthru
          _
      $region52: #{tpu_custom_call.1} parent=5 // pred_fallthru
        _
    $region6: #{tpu_custom_call.1} parent=1 // loop_footer
      %s20 = sadd.s32 1, %s16
    $region7: #{tpu_custom_call.1} parent=1 // loop_footer_branch
      %15 = sbr.rel target = $region3
    $region8: #{tpu_custom_call.1} parent=1 // loop_exit
      _
    %465 = vsyncpa [#allocation3], 1
    %s466 = scalar_lea.sflag [#allocation3], 1
    %467 = vsyncpa %s466, 1
    %468 = vsyncpa [#allocation6], 1
    %469 = vsyncpa [#allocation4], 1
    %s470 = scalar_lea.sflag [#allocation4], 1
    %471 = vsyncpa %s470, 1

// kernel: tpu_custom_call.1
$region0: #{tpu_custom_call.1}
  #allocation0 [shape = 'u32[]', space=smem, size = 0x4, offset = 0x4, fixed_abs, tag = 'smem constant byte address 0x4 - core index']
  #allocation1 [shape = 'u32[144,128]{1,0:T(1,128)}', space=vmem, size = 0x12000, scoped, tag = 'internal scratch']
  %s0 = inlined_call_operand.hbm [shape: f32[16,64], index: 0, kind: input, shape index: {}]
  %s1 = inlined_call_operand.hbm [shape: f32[64,512], index: 1, kind: input, shape index: {}]
  %s2 = inlined_call_operand.hbm [shape: f32[1,512], index: 2, kind: input, shape index: {}]
  %s3 = inlined_call_operand.hbm [shape: f32[16,512], index: 3, kind: output, shape index: {}]
  %s4 = sld [smem:[#allocation0]]
  $region57: #{tpu_custom_call.1} parent=0
    _
  %s6 = ssub.s32 1, %s4
  %s7 = scalar_select 0, %s6, %s4
  $region1: #{tpu_custom_call.1} parent=0
    #allocation2 [shape = 'u8[8192]{0}', space=vmem, size = 0x2000, scoped, tag = 'input window, operand 0']
    #allocation3 [shape = 's32[2]{0}', space=sflag, size = 0x8, scoped, tag = 'scoped memory for tpu_custom_call.1']
    #allocation4 [shape = 's32[2]{0}', space=sflag, size = 0x8, scoped, tag = 'scoped memory for tpu_custom_call.1']
    #allocation5 [shape = 'u8[131072]{0}', space=vmem, size = 0x20000, scoped, tag = 'input window, operand 1, single buffered']
    #allocation6 [shape = 's32[1]{0}', space=sflag, size = 0x4, scoped, tag = 'scoped memory for tpu_custom_call.1']
    #allocation7 [shape = 'u8[2048]{0}', space=vmem, size = 0x800, scoped, tag = 'input window, operand 2, single buffered']
    #allocation8 [shape = 'u8[32768]{0}', space=vmem, size = 0x8000, scoped, tag = 'output window, operand 0']
    %8 = vsyncpa [#allocation3], 0
    %s9 = scalar_lea.sflag [#allocation3], 1
    %10 = vsyncpa %s9, 0
    %11 = vsyncpa [#allocation6], 0
    %12 = vsyncpa [#allocation4], 0
    %s13 = scalar_lea.sflag [#allocation4], 1
    %14 = vsyncpa %s13, 0
    loop: start=0, step=1, limit=4
    $region2: #{tpu_custom_call.1} parent=1 // loop_pre_header
      _
    $region3: #{tpu_custom_call.1} parent=1 // loop_header
      %s16 = sphi 0, %s20
      %p17 = scmp.ge.s32.totalorder %s16, 4
      %s26 = sphi 0, %s28
      %s29 = sphi 0, %s26
      %s30 = sphi 0, %s29
      %s46 = sphi 0, %s30
      %s50 = sphi 0, %s50
      %s52 = sphi 0, %s50
      %s53 = sphi 0, %s52
      %s67 = sphi 0, %s53
      %s71 = sphi 0, %s71
      %s73 = sphi 0, %s71
      %s74 = sphi 0, %s73
      %s88 = sphi 0, %s74
      %s94 = sphi 0, %s96
      %s97 = sphi 0, %s94
      %s98 = sphi 0, %s97
      %s114 = sphi 0, %s98
    $region4: #{tpu_custom_call.1} parent=1 // loop_header_branch
      %19 = sbr.rel (%p17) target = $region8
    $region5: #{tpu_custom_call.1} parent=1 // loop_body
      %s21 = ssub.s32 %s16, 1
      %s22 = ssub.s32 %s16, 2
      %s23 = sadd.s32 %s16, 1
      %s24 = ssub.s32 %s16, %s23
      %p25 = scmp.eq.s32.totalorder %s24, 0
      %s27 = sadd.s32 %s26, 1
      %s28 = scalar_select %p25, %s26, %s27
      %p31 = pneg %p25
      %p32 = scmp.eq.s32.totalorder %s16, 1
      %p33 = por %p31, %p32
      %p34 = scmp.ne.s32.totalorder %s26, %s29
      %p35 = scmp.eq.s32.totalorder %s16, 0
      %p36 = por %p34, %p35
      %p37 = scmp.ne.s32.totalorder %s26, %s29
      %p38 = scmp.eq.s32.totalorder %s21, 1
      %p39 = por %p37, %p38
      %p40 = scmp.ne.s32.totalorder %s29, %s30
      %p41 = scmp.eq.s32.totalorder %s21, 0
      %p42 = por %p40, %p41
      %p43 = scmp.ne.s32.totalorder %s29, %s30
      %p44 = scmp.eq.s32.totalorder %s22, 1
      %p45 = por %p43, %p44
      %p47 = scmp.ne.s32.totalorder %s30, %s46
      %p48 = scmp.eq.s32.totalorder %s22, 0
      %p49 = por %p47, %p48
      %s51 = sadd.s32 %s50, 1
      %p54 = scmp.eq.s32.totalorder %s16, 1
      %p55 = scmp.ne.s32.totalorder %s50, %s52
      %p56 = scmp.eq.s32.totalorder %s16, 0
      %p57 = por %p55, %p56
      %p58 = scmp.ne.s32.totalorder %s50, %s52
      %p59 = scmp.eq.s32.totalorder %s21, 1
      %p60 = por %p58, %p59
      %p61 = scmp.ne.s32.totalorder %s52, %s53
      %p62 = scmp.eq.s32.totalorder %s21, 0
      %p63 = por %p61, %p62
      %p64 = scmp.ne.s32.totalorder %s52, %s53
      %p65 = scmp.eq.s32.totalorder %s22, 1
      %p66 = por %p64, %p65
      %p68 = scmp.ne.s32.totalorder %s53, %s67
      %p69 = scmp.eq.s32.totalorder %s22, 0
      %p70 = por %p68, %p69
      %s72 = sadd.s32 %s71, 1
      %p75 = scmp.eq.s32.totalorder %s16, 1
      %p76 = scmp.ne.s32.totalorder %s71, %s73
      %p77 = scmp.eq.s32.totalorder %s16, 0
      %p78 = por %p76, %p77
      %p79 = scmp.ne.s32.totalorder %s71, %s73
      %p80 = scmp.eq.s32.totalorder %s21, 1
      %p81 = por %p79, %p80
      %p82 = scmp.ne.s32.totalorder %s73, %s74
      %p83 = scmp.eq.s32.totalorder %s21, 0
      %p84 = por %p82, %p83
      %p85 = scmp.ne.s32.totalorder %s73, %s74
      %p86 = scmp.eq.s32.totalorder %s22, 1
      %p87 = por %p85, %p86
      %p89 = scmp.ne.s32.totalorder %s74, %s88
      %p90 = scmp.eq.s32.totalorder %s22, 0
      %p91 = por %p89, %p90
      %s92 = ssub.s32 %s16, %s23
      %p93 = scmp.eq.s32.totalorder %s92, 0
      %s95 = sadd.s32 %s94, 1
      %s96 = scalar_select %p93, %s94, %s95
      %p99 = pneg %p93
      %p100 = scmp.eq.s32.totalorder %s16, 1
      %p101 = por %p99, %p100
      %p102 = scmp.ne.s32.totalorder %s94, %s97
      %p103 = scmp.eq.s32.totalorder %s16, 0
      %p104 = por %p102, %p103
      %p105 = scmp.ne.s32.totalorder %s94, %s97
      %p106 = scmp.eq.s32.totalorder %s21, 1
      %p107 = por %p105, %p106
      %p108 = scmp.ne.s32.totalorder %s97, %s98
      %p109 = scmp.eq.s32.totalorder %s21, 0
      %p110 = por %p108, %p109
      %p111 = scmp.ne.s32.totalorder %s97, %s98
      %p112 = scmp.eq.s32.totalorder %s22, 1
      %p113 = por %p111, %p112
      %p115 = scmp.ne.s32.totalorder %s98, %s114
      %p116 = scmp.eq.s32.totalorder %s22, 0
      %p117 = por %p115, %p116
      %p118 = scmp.le.s32.totalorder 1, %s16
      %p119 = scmp.lt.s32.totalorder %s16, 3
      %p120 = pnand %p118, %p119
      %p121 = pneg %p120
      // Predicated region
      $region9: #{tpu_custom_call.1} parent=5 // pred_check
        _
      $region10: #{tpu_custom_call.1} parent=5 // pred_check_branch
        %123 = sbr.rel (%p120) target = $region12
      $region11: #{tpu_custom_call.1} parent=5 // pred_region
        %s124 = ssub.s32 %s16, 1
        // Predicated region
        $region13: #{tpu_custom_call.1} parent=11 // pred_check
          %p125 = pneg %p63
        $region14: #{tpu_custom_call.1} parent=11 // pred_check_branch
          %127 = sbr.rel (%p125) target = $region16
        $region15: #{tpu_custom_call.1} parent=11 // pred_region
          %s129 = ssub.s32 4096, 4096
          %130 = vsyncadd [#allocation6], %s129
          %s131 = sshll.u32 [#allocation5], 4
          %s132 = int_to_ptr.vmem [resolvable:$true] %s131
          %137 = dma.hbm_to_vmem [thread:$0]  %s1, 4096, %s132, [#allocation6], 512, 512, 32
        $region16: #{tpu_custom_call.1} parent=11 // pred_fallthru
          _
        // Predicated region
        $region17: #{tpu_custom_call.1} parent=11 // pred_check
          %p138 = pneg %p84
        $region18: #{tpu_custom_call.1} parent=11 // pred_check_branch
          %140 = sbr.rel (%p138) target = $region20
        $region19: #{tpu_custom_call.1} parent=11 // pred_region
          %s142 = ssub.s32 64, 64
          %143 = vsyncadd [#allocation6], %s142
          %s145 = sshll.u32 [#allocation7], 4
          %s146 = int_to_ptr.vmem [resolvable:$true] %s145
          %148 = dma.hbm_to_vmem [thread:$0]  %s2, 64, %s146, [#allocation6]
        $region20: #{tpu_custom_call.1} parent=11 // pred_fallthru
          _
      $region12: #{tpu_custom_call.1} parent=5 // pred_fallthru
        _
      %p149 = scmp.lt.s32.totalorder %s16, 2
      // Predicated region
      $region21: #{tpu_custom_call.1} parent=5 // pred_check
        %p150 = pneg %p149
      $region22: #{tpu_custom_call.1} parent=5 // pred_check_branch
        %152 = sbr.rel (%p150) target = $region24
      $region23: #{tpu_custom_call.1} parent=5 // pred_region
        // Predicated region
        $region25: #{tpu_custom_call.1} parent=23 // pred_check
          %p153 = pneg %p36
        $region26: #{tpu_custom_call.1} parent=23 // pred_check_branch
          %155 = sbr.rel (%p153) target = $region28
        $region27: #{tpu_custom_call.1} parent=23 // pred_region
          %s156 = sand.u32 %s26, 1
          %s157 = scalar_lea.sflag [#allocation3], %s156
          %s158 = sand.u32 %s26, 1
          %s159 = smul.addr %s158, 8
          %s160 = scalar_lea.vmem [#allocation2], %s159
          %s162 = ssub.s32 128, 128
          %163 = vsyncadd %s157, %s162
          %s164 = smul.addr %s16, 128
          %s165 = scalar_lea.hbm %s0, %s164
          %s167 = sshll.u32 %s160, 4
          %s168 = int_to_ptr.vmem [resolvable:$true] %s167
          %170 = dma.hbm_to_vmem [thread:$0]  %s165, 128, %s168, %s157
        $region28: #{tpu_custom_call.1} parent=23 // pred_fallthru
          _
      $region24: #{tpu_custom_call.1} parent=5 // pred_fallthru
        _
      %p171 = scmp.le.s32.totalorder 1, %s16
      %p172 = scmp.lt.s32.totalorder %s16, 3
      %p173 = pnand %p171, %p172
      %p174 = pneg %p173
      // Predicated region
      $region29: #{tpu_custom_call.1} parent=5 // pred_check
        _
      $region30: #{tpu_custom_call.1} parent=5 // pred_check_branch
        %176 = sbr.rel (%p173) target = $region32
      $region31: #{tpu_custom_call.1} parent=5 // pred_region
        %s177 = ssub.s32 %s16, 1
        %s178 = sand.u32 %s29, 1
        %s179 = scalar_lea.sflag [#allocation3], %s178
        %s180 = sand.u32 %s29, 1
        %s181 = smul.addr %s180, 8
        %s182 = scalar_lea.vmem [#allocation2], %s181
        // Predicated region
        $region33: #{tpu_custom_call.1} parent=31 // pred_check
          %p183 = pneg %p42
        $region34: #{tpu_custom_call.1} parent=31 // pred_check_branch
          %185 = sbr.rel (%p183) target = $region36
        $region35: #{tpu_custom_call.1} parent=31 // pred_region
          %186 = dma.done %s179, 128
        $region36: #{tpu_custom_call.1} parent=31 // pred_fallthru
          _
        // Predicated region
        $region37: #{tpu_custom_call.1} parent=31 // pred_check
          %p187 = pneg %p63
        $region38: #{tpu_custom_call.1} parent=31 // pred_check_branch
          %189 = sbr.rel (%p187) target = $region40
        $region39: #{tpu_custom_call.1} parent=31 // pred_region
          %190 = dma.done [#allocation6], 4096
        $region40: #{tpu_custom_call.1} parent=31 // pred_fallthru
          _
        // Predicated region
        $region41: #{tpu_custom_call.1} parent=31 // pred_check
          %p191 = pneg %p84
        $region42: #{tpu_custom_call.1} parent=31 // pred_check_branch
          %193 = sbr.rel (%p191) target = $region44
        $region43: #{tpu_custom_call.1} parent=31 // pred_region
          %194 = dma.done [#allocation6], 64
        $region44: #{tpu_custom_call.1} parent=31 // pred_fallthru
          _
        %s195 = sand.u32 %s29, 1
        %s196 = scalar_lea.sflag [#allocation3], %s195
        %s197 = sand.u32 %s29, 1
        %s198 = smul.addr %s197, 8
        %s199 = scalar_lea.vmem [#allocation2], %s198
        %p200 = pneg %p42
        %p201 = pneg %p39
        %p202 = pneg %p63
        %p203 = pneg %p60
        %p204 = pneg %p84
        %p205 = pneg %p81
        %p206 = pneg %p110
        %p207 = pneg %p107
        %s208 = sand.u32 %s97, 1
        %s209 = scalar_lea.sflag [#allocation4], %s208
        %s210 = sand.u32 %s97, 1
        %s211 = smul.addr %s210, 32
        %s212 = scalar_lea.vmem [#allocation8], %s211
        %v213 = vld [vmem:[%s182] sm:$0xff]
        %v214 = vld [vmem:[#allocation5] sm:$0xff]
        %v215 = vld [vmem:[#allocation5 + $0x8] sm:$0xff]
        %v216 = vld [vmem:[#allocation5 + $0x10] sm:$0xff]
        %v217 = vld [vmem:[#allocation5 + $0x18] sm:$0xff]
        %v218 = vld [vmem:[#allocation5 + $0x20] sm:$0xff]
        %v219 = vld [vmem:[#allocation5 + $0x28] sm:$0xff]
        %v220 = vld [vmem:[#allocation5 + $0x30] sm:$0xff]
        %v221 = vld [vmem:[#allocation5 + $0x38] sm:$0xff]
        %v222 = vld [vmem:[#allocation5 + $0x40] sm:$0xff]
        %v223 = vld [vmem:[#allocation5 + $0x48] sm:$0xff]
        %v224 = vld [vmem:[#allocation5 + $0x50] sm:$0xff]
        %v225 = vld [vmem:[#allocation5 + $0x58] sm:$0xff]
        %v226 = vld [vmem:[#allocation5 + $0x60] sm:$0xff]
        %v227 = vld [vmem:[#allocation5 + $0x68] sm:$0xff]
        %v228 = vld [vmem:[#allocation5 + $0x70] sm:$0xff]
        %v229 = vld [vmem:[#allocation5 + $0x78] sm:$0xff]
        %v230 = vld [vmem:[#allocation5 + $0x80] sm:$0xff]
        %v231 = vld [vmem:[#allocation5 + $0x88] sm:$0xff]
        %v232 = vld [vmem:[#allocation5 + $0x90] sm:$0xff]
        %v233 = vld [vmem:[#allocation5 + $0x98] sm:$0xff]
        %v234 = vld [vmem:[#allocation5 + $0xa0] sm:$0xff]
        %v235 = vld [vmem:[#allocation5 + $0xa8] sm:$0xff]
        %v236 = vld [vmem:[#allocation5 + $0xb0] sm:$0xff]
        %v237 = vld [vmem:[#allocation5 + $0xb8] sm:$0xff]
        %v238 = vld [vmem:[#allocation5 + $0xc0] sm:$0xff]
        %v239 = vld [vmem:[#allocation5 + $0xc8] sm:$0xff]
        %v240 = vld [vmem:[#allocation5 + $0xd0] sm:$0xff]
        %v241 = vld [vmem:[#allocation5 + $0xd8] sm:$0xff]
        %v242 = vld [vmem:[#allocation5 + $0xe0] sm:$0xff]
        %v243 = vld [vmem:[#allocation5 + $0xe8] sm:$0xff]
        %v244 = vld [vmem:[#allocation5 + $0xf0] sm:$0xff]
        %v245 = vld [vmem:[#allocation5 + $0xf8] sm:$0xff]
        %v246 = vld [vmem:[#allocation7] sm:$0xf]
        %v248 = vlaneseq
        %v249 = vshrl.u32 %v248, 7
        %v250 = vsub.s32 0, %v249
        %v251 = vrot.slane %v246, %v250
        %v252 = vlaneseq
        %v253 = vshrl.u32 %v252, 7
        %v254 = vsub.s32 1, %v253
        %v255 = vrot.slane %v246, %v254
        %v256 = vlaneseq
        %v257 = vshrl.u32 %v256, 7
        %v258 = vsub.s32 2, %v257
        %v259 = vrot.slane %v246, %v258
        %v260 = vlaneseq
        %v261 = vshrl.u32 %v260, 7
        %v262 = vsub.s32 3, %v261
        %v263 = vrot.slane %v246, %v262
        %vm268 = vcmask 523264
        %v270 = vsel %vm268, %v213, 0
        %272 = vmatprep.subr.mxu0 0.0
        %273 = vmatpush1.msra.mxu0 0.0
        %274 = vmatprep.subr.mxu0 0.0
        %275 = vmatpush1.msra.mxu0 0.0
        %276 = vmatprep.subr.mxu0 0.0
        %277 = vmatpush1.msra.mxu0 0.0
        %278 = vmatprep.subr.mxu0 0.0
        %279 = vmatpush1.msra.mxu0 0.0
        %280 = vmatprep.subr.mxu0 0.0
        %281 = vmatpush1.msra.mxu0 0.0
        %282 = vmatprep.subr.mxu0 0.0
        %283 = vmatpush1.msra.mxu0 0.0
        %284 = vmatprep.subr.mxu0 0.0
        %285 = vmatpush1.msra.mxu0 0.0
        %286 = vmatprep.subr.mxu0 0.0
        %287 = vmatpush1.msra.mxu0 0.0
        %288 = vmatprep.subr.mxu0 %v243
        %289 = vmatpush1.msra.mxu0 %v242
        %290 = vmatprep.subr.mxu0 %v239
        %291 = vmatpush1.msra.mxu0 %v238
        %292 = vmatprep.subr.mxu0 %v235
        %293 = vmatpush1.msra.mxu0 %v234
        %294 = vmatprep.subr.mxu0 %v231
        %295 = vmatpush1.msra.mxu0 %v230
        %296 = vmatprep.subr.mxu0 %v227
        %297 = vmatpush1.msra.mxu0 %v226
        %298 = vmatprep.subr.mxu0 %v223
        %299 = vmatpush1.msra.mxu0 %v222
        %300 = vmatprep.subr.mxu0 %v219
        %301 = vmatpush1.msra.mxu0 %v218
        %302 = vmatprep.subr.mxu0 %v215
        %303 = vmatpush1.msra.mxu0 %v214
        %304 = vmatprep.subr.mxu0 0.0
        %305 = vmatpush2.msra.mxu0 0.0
        %306 = vmatprep.subr.mxu0 0.0
        %307 = vmatpush2.msra.mxu0 0.0
        %308 = vmatprep.subr.mxu0 0.0
        %309 = vmatpush2.msra.mxu0 0.0
        %310 = vmatprep.subr.mxu0 0.0
        %311 = vmatpush2.msra.mxu0 0.0
        %312 = vmatprep.subr.mxu0 0.0
        %313 = vmatpush2.msra.mxu0 0.0
        %314 = vmatprep.subr.mxu0 0.0
        %315 = vmatpush2.msra.mxu0 0.0
        %316 = vmatprep.subr.mxu0 0.0
        %317 = vmatpush2.msra.mxu0 0.0
        %318 = vmatprep.subr.mxu0 0.0
        %319 = vmatpush2.msra.mxu0 0.0
        %320 = vmatprep.subr.mxu0 0.0
        %321 = vmatpush2.msra.mxu0 0.0
        %322 = vmatprep.subr.mxu0 0.0
        %323 = vmatpush2.msra.mxu0 0.0
        %324 = vmatprep.subr.mxu0 0.0
        %325 = vmatpush2.msra.mxu0 0.0
        %326 = vmatprep.subr.mxu0 0.0
        %327 = vmatpush2.msra.mxu0 0.0
        %328 = vmatprep.subr.mxu0 0.0
        %329 = vmatpush2.msra.mxu0 0.0
        %330 = vmatprep.subr.mxu0 0.0
        %331 = vmatpush2.msra.mxu0 0.0
        %332 = vmatprep.subr.mxu0 0.0
        %333 = vmatpush2.msra.mxu0 0.0
        %334 = vmatprep.subr.mxu0 0.0
        %335 = vmatpush2.msra.mxu0 0.0
        %336 = vmatprep.mubr.f32.mxu0 0.0
        %337 = vmatmul.mubr.f32.gmra.mxu0 %v270
        %v338 = vpop.f32.mrf.mxu0
        %v339 = vadd.f32 %v251, %v338
        %v340 = vpop.f32.mrf.mxu0
        %v341 = vadd.f32 %v255, %v340
        %342 = vdwg.mxu0
        %343 = vmatprep.subr.mxu0 0.0
        %344 = vmatpush1.msra.mxu0 0.0
        %345 = vmatprep.subr.mxu0 0.0
        %346 = vmatpush1.msra.mxu0 0.0
        %347 = vmatprep.subr.mxu0 0.0
        %348 = vmatpush1.msra.mxu0 0.0
        %349 = vmatprep.subr.mxu0 0.0
        %350 = vmatpush1.msra.mxu0 0.0
        %351 = vmatprep.subr.mxu0 0.0
        %352 = vmatpush1.msra.mxu0 0.0
        %353 = vmatprep.subr.mxu0 0.0
        %354 = vmatpush1.msra.mxu0 0.0
        %355 = vmatprep.subr.mxu0 0.0
        %356 = vmatpush1.msra.mxu0 0.0
        %357 = vmatprep.subr.mxu0 0.0
        %358 = vmatpush1.msra.mxu0 0.0
        %359 = vmatprep.subr.mxu0 %v245
        %360 = vmatpush1.msra.mxu0 %v244
        %361 = vmatprep.subr.mxu0 %v241
        %362 = vmatpush1.msra.mxu0 %v240
        %363 = vmatprep.subr.mxu0 %v237
        %364 = vmatpush1.msra.mxu0 %v236
        %365 = vmatprep.subr.mxu0 %v233
        %366 = vmatpush1.msra.mxu0 %v232
        %367 = vmatprep.subr.mxu0 %v229
        %368 = vmatpush1.msra.mxu0 %v228
        %369 = vmatprep.subr.mxu0 %v225
        %370 = vmatpush1.msra.mxu0 %v224
        %371 = vmatprep.subr.mxu0 %v221
        %372 = vmatpush1.msra.mxu0 %v220
        %373 = vmatprep.subr.mxu0 %v217
        %374 = vmatpush1.msra.mxu0 %v216
        %375 = vmatprep.subr.mxu0 0.0
        %376 = vmatpush2.msra.mxu0 0.0
        %377 = vmatprep.subr.mxu0 0.0
        %378 = vmatpush2.msra.mxu0 0.0
        %379 = vmatprep.subr.mxu0 0.0
        %380 = vmatpush2.msra.mxu0 0.0
        %381 = vmatprep.subr.mxu0 0.0
        %382 = vmatpush2.msra.mxu0 0.0
        %383 = vmatprep.subr.mxu0 0.0
        %384 = vmatpush2.msra.mxu0 0.0
        %385 = vmatprep.subr.mxu0 0.0
        %386 = vmatpush2.msra.mxu0 0.0
        %387 = vmatprep.subr.mxu0 0.0
        %388 = vmatpush2.msra.mxu0 0.0
        %389 = vmatprep.subr.mxu0 0.0
        %390 = vmatpush2.msra.mxu0 0.0
        %391 = vmatprep.subr.mxu0 0.0
        %392 = vmatpush2.msra.mxu0 0.0
        %393 = vmatprep.subr.mxu0 0.0
        %394 = vmatpush2.msra.mxu0 0.0
        %395 = vmatprep.subr.mxu0 0.0
        %396 = vmatpush2.msra.mxu0 0.0
        %397 = vmatprep.subr.mxu0 0.0
        %398 = vmatpush2.msra.mxu0 0.0
        %399 = vmatprep.subr.mxu0 0.0
        %400 = vmatpush2.msra.mxu0 0.0
        %401 = vmatprep.subr.mxu0 0.0
        %402 = vmatpush2.msra.mxu0 0.0
        %403 = vmatprep.subr.mxu0 0.0
        %404 = vmatpush2.msra.mxu0 0.0
        %405 = vmatprep.subr.mxu0 0.0
        %406 = vmatpush2.msra.mxu0 0.0
        %407 = vmatprep.mubr.f32.mxu0 0.0
        %408 = vmatmul.mubr.f32.gmra.mxu0 %v270
        %v409 = vpop.f32.mrf.mxu0
        %v410 = vadd.f32 %v259, %v409
        %v411 = vpop.f32.mrf.mxu0
        %v412 = vadd.f32 %v263, %v411
        %413 = vdwg.mxu0
        %v414 = vmul.f32 %v339, 1.442695
        %v415 = vpow.pop %v414
        %v416 = vmul.f32 %v341, 1.442695
        %v417 = vpow.pop %v416
        %v418 = vmul.f32 %v410, %v415
        %v419 = vmul.f32 %v412, %v417
        %420 = vst [vmem:[%s212] sm:$0xff] %v418
        %421 = vst [vmem:[%s212 + $0x8] sm:$0xff] %v419
        %v422 = vsub.f32 0.0, %v339
        %v423 = vsub.f32 0.0, %v341
        %v424 = vmul.f32 %v422, 1.442695
        %v425 = vpow.pop %v424
        %v426 = vmul.f32 %v423, 1.442695
        %v427 = vpow.pop %v426
        %v428 = vmul.f32 %v410, %v425
        %v429 = vmul.f32 %v412, %v427
        %430 = vst [vmem:[%s212 + $0x10] sm:$0xff] %v428
        %431 = vst [vmem:[%s212 + $0x18] sm:$0xff] %v429
        %s432 = sand.u32 %s97, 1
        %s433 = scalar_lea.sflag [#allocation4], %s432
        %s434 = sand.u32 %s97, 1
        %s435 = smul.addr %s434, 32
        %s436 = scalar_lea.vmem [#allocation8], %s435
        // Predicated region
        $region45: #{tpu_custom_call.1} parent=31 // pred_check
          %p437 = pneg %p107
        $region46: #{tpu_custom_call.1} parent=31 // pred_check_branch
          %439 = sbr.rel (%p437) target = $region48
        $region47: #{tpu_custom_call.1} parent=31 // pred_region
          %s441 = ssub.s32 512, 512
          %442 = vsyncadd %s433, %s441
          %s443 = smul.addr %s21, 4
          %s444 = smul.addr %s443, 128
          %s445 = scalar_lea.hbm %s3, %s444
          %s447 = sshll.u32 %s436, 4
          %s448 = int_to_ptr.vmem [resolvable:$true] %s447
          %450 = dma.vmem_to_hbm [thread:$0]  %s448, 512, %s445, %s433
        $region48: #{tpu_custom_call.1} parent=31 // pred_fallthru
          _
      $region32: #{tpu_custom_call.1} parent=5 // pred_fallthru
        _
      %p451 = scmp.le.s32.totalorder 2, %s16
      // Predicated region
      $region49: #{tpu_custom_call.1} parent=5 // pred_check
        %p452 = pneg %p451
      $region50: #{tpu_custom_call.1} parent=5 // pred_check_branch
        %454 = sbr.rel (%p452) target = $region52
      $region51: #{tpu_custom_call.1} parent=5 // pred_region
        %s455 = ssub.s32 %s16, 2
        // Predicated region
        $region53: #{tpu_custom_call.1} parent=51 // pred_check
          %p456 = pneg %p113
        $region54: #{tpu_custom_call.1} parent=51 // pred_check_branch
          %458 = sbr.rel (%p456) target = $region56
        $region55: #{tpu_custom_call.1} parent=51 // pred_region
          %s459 = sand.u32 %s98, 1
          %s460 = scalar_lea.sflag [#allocation4], %s459
          %s461 = sand.u32 %s98, 1
          %s462 = smul.addr %s461, 32
          %s463 = scalar_lea.vmem [#allocation8], %s462
          %464 = dma.done %s460, 512
        $region56: #{tpu_custom_call.1} parent=51 // pred_fallthru
          _
      $region52: #{tpu_custom_call.1} parent=5 // pred_fallthru
        _
    $region6: #{tpu_custom_call.1} parent=1 // loop_footer
      %s20 = sadd.s32 1, %s16
    $region7: #{tpu_custom_call.1} parent=1 // loop_footer_branch
      %15 = sbr.rel target = $region3
    $region8: #{tpu_custom_call.1} parent=1 // loop_exit
      _
    %465 = vsyncpa [#allocation3], 1
    %s466 = scalar_lea.sflag [#allocation3], 1
    %467 = vsyncpa %s466, 1
    %468 = vsyncpa [#allocation6], 1
    %469 = vsyncpa [#allocation4], 1
    %s470 = scalar_lea.sflag [#allocation4], 1
    %471 = vsyncpa %s470, 1

</llo_original>
